<compile_context>
chip_gen: v6e
topology: v6e:2x2x1
jax: 0.10.0
libtpu: 0.0.40
codegen_flags: <defaults>
</compile_context>

<pallas_src>
import functools

import jax
import jax.numpy as jnp
from jax.experimental import pallas as pl
from jax.experimental.pallas import tpu as pltpu


# ----------------------------------------------------------------------------
# helpers
# ----------------------------------------------------------------------------
def _round_up(x, m):
    return ((x + m - 1) // m) * m


def _pick_tile(total, unit, target):
    """Largest multiple-of-`unit` divisor of `total` that is <= target."""
    best = unit
    t = unit
    limit = min(total, target)
    while t <= limit:
        if total % t == 0:
            best = t
        t += unit
    return best


# ----------------------------------------------------------------------------
# Pallas kernel: tiled  out = [relu?(X @ W + b)] (@ W2 + b2)
# grid = (M_tiles, K_tiles); f32 accumulator in VMEM scratch.
# ----------------------------------------------------------------------------
def _fused_matmul_kernel(*refs, apply_relu, fuse_second, k_steps):
    if fuse_second:
        x_ref, w_ref, b_ref, w2_ref, b2_ref, o_ref, acc_ref = refs
    else:
        x_ref, w_ref, b_ref, o_ref, acc_ref = refs
        w2_ref = b2_ref = None

    k = pl.program_id(1)

    @pl.when(k == 0)
    def _init():
        acc_ref[...] = jnp.zeros_like(acc_ref)

    acc_ref[...] += jnp.dot(x_ref[...], w_ref[...],
                            preferred_element_type=jnp.float32)

    @pl.when(k == k_steps - 1)
    def _finalize():
        acc = acc_ref[...] + b_ref[...]              # (TM, Np) + (1, Np)
        if apply_relu:
            acc = jnp.maximum(acc, 0.0)
        if fuse_second:                              # fused 1x1-conv epilogue
            acc = jnp.dot(acc.astype(w2_ref.dtype), w2_ref[...],
                          preferred_element_type=jnp.float32) + b2_ref[...]
        o_ref[...] = acc.astype(o_ref.dtype)


def fused_matmul(x, w, b, w2=None, b2=None, *, apply_relu,
                 compute_dtype=jnp.bfloat16, tm=512, tk=512):
    """x: (M, K), w: (K, N), b: (N,), optional w2: (N, N2), b2: (N2,) -> f32."""
    M, K = x.shape
    Kw, N = w.shape
    assert K == Kw
    fuse = w2 is not None

    # Pad: K and channel dims to multiples of 128 (MXU fill + lane-dense
    # stores); M to a multiple of 8 (sublane alignment).
    Mp = _round_up(M, 8)
    Kp = _round_up(K, 128)
    Np = _round_up(N, 128)
    TM = _pick_tile(Mp, 8, tm)
    TK = _pick_tile(Kp, 128, tk)
    k_steps = Kp // TK

    xp = jnp.pad(x.astype(compute_dtype), ((0, Mp - M), (0, Kp - K)))
    wp = jnp.pad(w.astype(compute_dtype), ((0, Kp - K), (0, Np - N)))
    bp = jnp.pad(b.astype(jnp.float32).reshape(1, N), ((0, 0), (0, Np - N)))

    inputs = [xp, wp, bp]
    in_specs = [
        pl.BlockSpec((TM, TK), lambda i, k: (i, k)),
        pl.BlockSpec((TK, Np), lambda i, k: (k, 0)),
        pl.BlockSpec((1, Np), lambda i, k: (0, 0)),
    ]

    if fuse:
        Nw2, N2 = w2.shape
        assert Nw2 == N
        N2p = _round_up(N2, 128)
        w2p = jnp.pad(w2.astype(compute_dtype), ((0, Np - N), (0, N2p - N2)))
        b2p = jnp.pad(b2.astype(jnp.float32).reshape(1, N2),
                      ((0, 0), (0, N2p - N2)))
        inputs += [w2p, b2p]
        in_specs += [
            pl.BlockSpec((Np, N2p), lambda i, k: (0, 0)),
            pl.BlockSpec((1, N2p), lambda i, k: (0, 0)),
        ]
        n_out, n_out_p = N2, N2p
    else:
        n_out, n_out_p = N, Np

    kernel = functools.partial(_fused_matmul_kernel, apply_relu=apply_relu,
                               fuse_second=fuse, k_steps=k_steps)

    out = pl.pallas_call(
        kernel,
        out_shape=jax.ShapeDtypeStruct((Mp, n_out_p), jnp.float32),
        grid=(Mp // TM, k_steps),
        in_specs=in_specs,
        out_specs=pl.BlockSpec((TM, n_out_p), lambda i, k: (i, 0)),
        scratch_shapes=[pltpu.VMEM((TM, Np), jnp.float32)],
        compiler_params=pltpu.CompilerParams(
            dimension_semantics=("parallel", "arbitrary"),
            vmem_limit_bytes=32 * 1024 * 1024),
    )(*inputs)

    return out[:M, :n_out]


# ----------------------------------------------------------------------------
# Conv2d via im2col (XLA glue) + one fused Pallas kernel (hot path)
# ----------------------------------------------------------------------------
def conv2d_nhwc(x_nhwc, w_oihw, b, *, stride, padding, apply_relu,
                fuse_1x1_w=None, fuse_1x1_b=None,
                compute_dtype=jnp.bfloat16):
    """Conv2d with PyTorch OIHW weights on NHWC input.

    If fuse_1x1_w/b are given (a following 1x1 conv, layout (Cout2, Cout, 1, 1)),
    it is applied inside the same Pallas kernel after the ReLU.
    """
    n, h, w, cin = x_nhwc.shape
    cout, cin_w, kh, kw = w_oihw.shape
    assert cin == cin_w

    xp = jnp.pad(x_nhwc, ((0, 0), (padding, padding),
                          (padding, padding), (0, 0)))
    ho = (h + 2 * padding - kh) // stride + 1
    wo = (w + 2 * padding - kw) // stride + 1

    # im2col; feature order (kh, kw, cin) matches the reshaped weight below.
    cols = [xp[:, i:i + stride * ho:stride, j:j + stride * wo:stride, :]
            for i in range(kh) for j in range(kw)]
    patches = jnp.concatenate(cols, axis=-1).reshape(n * ho * wo, kh * kw * cin)

    # (Cout, Cin, KH, KW) -> (KH, KW, Cin, Cout) -> (KH*KW*Cin, Cout)
    w_mat = jnp.transpose(w_oihw, (2, 3, 1, 0)).reshape(kh * kw * cin, cout)

    w2_mat = b2 = None
    n_out = cout
    if fuse_1x1_w is not None:
        cout2, cin2, kh2, kw2 = fuse_1x1_w.shape
        assert cin2 == cout and kh2 == 1 and kw2 == 1
        w2_mat = jnp.transpose(fuse_1x1_w.reshape(cout2, cout), (1, 0))
        b2 = fuse_1x1_b
        n_out = cout2

    out = fused_matmul(patches, w_mat, b, w2_mat, b2, apply_relu=apply_relu,
                       compute_dtype=compute_dtype)
    return out.reshape(n, ho, wo, n_out)


# ----------------------------------------------------------------------------
# Encoder forward (matches the PyTorch module semantics)
# ----------------------------------------------------------------------------
def encoder_forward(x_nchw, params, *, compute_dtype=jnp.bfloat16):
    x = jnp.transpose(x_nchw, (0, 2, 3, 1))             # NCHW -> NHWC
    x = conv2d_nhwc(x, params["w1"], params["b1"], stride=2, padding=1,
                    apply_relu=True, compute_dtype=compute_dtype)
    # conv2 + ReLU + conv3 (1x1) fused into a single Pallas kernel.
    x = conv2d_nhwc(x, params["w2"], params["b2"], stride=2, padding=1,
                    apply_relu=True,
                    fuse_1x1_w=params["w3"], fuse_1x1_b=params["b3"],
                    compute_dtype=compute_dtype)
    return jnp.transpose(x, (0, 3, 1, 2))                # NHWC -> NCHW


def init_params(key, in_dim, hidden_dim, embedding_dim):
    ks = jax.random.split(key, 6)

    def uinit(k, shape, fan_in):
        bound = 1.0 / jnp.sqrt(fan_in)
        return jax.random.uniform(k, shape, jnp.float32, -bound, bound)

    return {
        "w1": uinit(ks[0], (hidden_dim, in_dim, 4, 4), in_dim * 16),
        "b1": uinit(ks[1], (hidden_dim,), in_dim * 16),
        "w2": uinit(ks[2], (hidden_dim, hidden_dim, 4, 4), hidden_dim * 16),
        "b2": uinit(ks[3], (hidden_dim,), hidden_dim * 16),
        "w3": uinit(ks[4], (embedding_dim, hidden_dim, 1, 1), hidden_dim),
        "b3": uinit(ks[5], (embedding_dim,), hidden_dim),
    }


if __name__ == "__main__":
    key = jax.random.PRNGKey(0)
    k_x, k_p = jax.random.split(key)

    batch, in_dim, spatial = 2, 4, 16
    hidden_dim, embedding_dim = 32, 16

    x = jax.random.normal(k_x, (batch, in_dim, spatial, spatial), jnp.float32)
    params = init_params(k_p, in_dim, hidden_dim, embedding_dim)

    out = jax.jit(encoder_forward)(x, params)
    out = jax.block_until_ready(out)

    assert out.shape == (batch, embedding_dim, spatial // 4, spatial // 4), out.shape
    assert out.dtype == jnp.float32
    print("KERNEL_OK")
</pallas_src>

<mosaic_0001>
module attributes {stable_mosaic.version = 11 : i64} {
  func.func @_fused_matmul_kernel(%arg0: i32, %arg1: i32, %arg2: memref<128x128xbf16, #tpu.memory_space<vmem>>, %arg3: memref<128x128xbf16, #tpu.memory_space<vmem>>, %arg4: memref<1x128xf32, #tpu.memory_space<vmem>>, %arg5: memref<128x128xf32, #tpu.memory_space<vmem>>, %arg6: memref<128x128xf32, #tpu.memory_space<vmem>>) attributes {dimension_semantics = [#tpu.dimension_semantics<parallel>, #tpu.dimension_semantics<arbitrary>], iteration_bounds = array<i64: 1, 1>, scalar_prefetch = 0 : i64, scratch_operands = 1 : i64, tpu.core_type = #tpu.core_type<tc>, window_params = [{transform_indices = @transform_0, window_bounds = array<i64: 128, 128>}, {transform_indices = @transform_1, window_bounds = array<i64: 128, 128>}, {pipeline_mode = #tpu.pipeline_mode<synchronous>, transform_indices = @transform_2, window_bounds = array<i64: 1, 128>}, {transform_indices = @transform_3, window_bounds = array<i64: 128, 128>}]} {
    %c0_i32 = arith.constant 0 : i32
    %0 = arith.cmpi eq, %arg1, %c0_i32 : i32
    %1 = arith.extui %0 : i1 to i32
    %c0_i32_0 = arith.constant 0 : i32
    %2 = arith.cmpi ne, %1, %c0_i32_0 : i32
    scf.if %2 {
      %cst_10 = arith.constant 0.000000e+00 : f32
      %12 = vector.broadcast %cst_10 : f32 to vector<128x128xf32>
      %c0_11 = arith.constant 0 : index
      %c0_12 = arith.constant 0 : index
      %13 = vector.load %arg6[%c0_11, %c0_12] : memref<128x128xf32, #tpu.memory_space<vmem>>, vector<128x128xf32>
      tpu.vector_store %arg6[%c0_11, %c0_12], %12 {strides = array<i32>} : memref<128x128xf32, #tpu.memory_space<vmem>>, vector<128x128xf32>,
    } else {
    }
    %c0 = arith.constant 0 : index
    %c0_1 = arith.constant 0 : index
    %3 = vector.load %arg6[%c0, %c0_1] : memref<128x128xf32, #tpu.memory_space<vmem>>, vector<128x128xf32>
    %c0_2 = arith.constant 0 : index
    %c0_3 = arith.constant 0 : index
    %4 = vector.load %arg2[%c0_2, %c0_3] : memref<128x128xbf16, #tpu.memory_space<vmem>>, vector<128x128xbf16>
    %c0_4 = arith.constant 0 : index
    %c0_5 = arith.constant 0 : index
    %5 = vector.load %arg3[%c0_4, %c0_5] : memref<128x128xbf16, #tpu.memory_space<vmem>>, vector<128x128xbf16>
    %cst = arith.constant dense<0.000000e+00> : vector<128x128xf32>
    %6 = tpu.matmul %4, %5, %cst {dimension_numbers = #tpu.dot_dimension_numbers<[1], [0], [0], [1], [0, 0, 1, 1], [], []>} : vector<128x128xbf16>, vector<128x128xbf16>, vector<128x128xf32> -> vector<128x128xf32>
    %7 = arith.addf %3, %6 : vector<128x128xf32>
    %c0_6 = arith.constant 0 : index
    %c0_7 = arith.constant 0 : index
    %8 = vector.load %arg6[%c0_6, %c0_7] : memref<128x128xf32, #tpu.memory_space<vmem>>, vector<128x128xf32>
    tpu.vector_store %arg6[%c0_6, %c0_7], %7 {strides = array<i32>} : memref<128x128xf32, #tpu.memory_space<vmem>>, vector<128x128xf32>,
    %c0_i32_8 = arith.constant 0 : i32
    %9 = arith.cmpi eq, %arg1, %c0_i32_8 : i32
    %10 = arith.extui %9 : i1 to i32
    %c0_i32_9 = arith.constant 0 : i32
    %11 = arith.cmpi ne, %10, %c0_i32_9 : i32
    scf.if %11 {
      %c0_10 = arith.constant 0 : index
      %c0_11 = arith.constant 0 : index
      %12 = vector.load %arg6[%c0_10, %c0_11] : memref<128x128xf32, #tpu.memory_space<vmem>>, vector<128x128xf32>
      %c0_12 = arith.constant 0 : index
      %c0_13 = arith.constant 0 : index
      %13 = vector.load %arg4[%c0_12, %c0_13] : memref<1x128xf32, #tpu.memory_space<vmem>>, vector<1x128xf32>
      %14 = vector.broadcast %13 : vector<1x128xf32> to vector<128x128xf32>
      %15 = arith.addf %12, %14 : vector<128x128xf32>
      %cst_14 = arith.constant 0.000000e+00 : f32
      %16 = vector.broadcast %cst_14 : f32 to vector<128x128xf32>
      %17 = arith.maximumf %15, %16 : vector<128x128xf32>
      %c0_15 = arith.constant 0 : index
      %c0_16 = arith.constant 0 : index
      %18 = vector.load %arg5[%c0_15, %c0_16] : memref<128x128xf32, #tpu.memory_space<vmem>>, vector<128x128xf32>
      tpu.vector_store %arg5[%c0_15, %c0_16], %17 {strides = array<i32>} : memref<128x128xf32, #tpu.memory_space<vmem>>, vector<128x128xf32>,
    } else {
    }
    return
  }
  func.func @transform_0(%arg0: i32, %arg1: i32) -> (i32, i32) {
    %c0_i32 = arith.constant 0 : i32
    return %arg0, %arg1 : i32, i32
  }
  func.func @transform_1(%arg0: i32, %arg1: i32) -> (i32, i32) {
    %c0_i32 = arith.constant 0 : i32
    %c0_i32_0 = arith.constant 0 : i32
    return %arg1, %c0_i32 : i32, i32
  }
  func.func @transform_2(%arg0: i32, %arg1: i32) -> (i32, i32) {
    %c0_i32 = arith.constant 0 : i32
    %c0_i32_0 = arith.constant 0 : i32
    %c0_i32_1 = arith.constant 0 : i32
    return %c0_i32, %c0_i32_0 : i32, i32
  }
  func.func @transform_3(%arg0: i32, %arg1: i32) -> (i32, i32) {
    %c0_i32 = arith.constant 0 : i32
    %c0_i32_0 = arith.constant 0 : i32
    return %arg0, %c0_i32 : i32, i32
  }
}

module attributes {stable_mosaic.version = 11 : i64} {
  func.func @_fused_matmul_kernel(%arg0: i32, %arg1: i32, %arg2: memref<32x512xbf16, #tpu.memory_space<vmem>>, %arg3: memref<512x128xbf16, #tpu.memory_space<vmem>>, %arg4: memref<1x128xf32, #tpu.memory_space<vmem>>, %arg5: memref<128x128xbf16, #tpu.memory_space<vmem>>, %arg6: memref<1x128xf32, #tpu.memory_space<vmem>>, %arg7: memref<32x128xf32, #tpu.memory_space<vmem>>, %arg8: memref<32x128xf32, #tpu.memory_space<vmem>>) attributes {dimension_semantics = [#tpu.dimension_semantics<parallel>, #tpu.dimension_semantics<arbitrary>], iteration_bounds = array<i64: 1, 1>, scalar_prefetch = 0 : i64, scratch_operands = 1 : i64, tpu.core_type = #tpu.core_type<tc>, window_params = [{transform_indices = @transform_0, window_bounds = array<i64: 32, 512>}, {transform_indices = @transform_1, window_bounds = array<i64: 512, 128>}, {pipeline_mode = #tpu.pipeline_mode<synchronous>, transform_indices = @transform_2, window_bounds = array<i64: 1, 128>}, {pipeline_mode = #tpu.pipeline_mode<synchronous>, transform_indices = @transform_3, window_bounds = array<i64: 128, 128>}, {pipeline_mode = #tpu.pipeline_mode<synchronous>, transform_indices = @transform_4, window_bounds = array<i64: 1, 128>}, {transform_indices = @transform_5, window_bounds = array<i64: 32, 128>}]} {
    %c0_i32 = arith.constant 0 : i32
    %0 = arith.cmpi eq, %arg1, %c0_i32 : i32
    %1 = arith.extui %0 : i1 to i32
    %c0_i32_0 = arith.constant 0 : i32
    %2 = arith.cmpi ne, %1, %c0_i32_0 : i32
    scf.if %2 {
      %cst_10 = arith.constant 0.000000e+00 : f32
      %12 = vector.broadcast %cst_10 : f32 to vector<32x128xf32>
      %c0_11 = arith.constant 0 : index
      %c0_12 = arith.constant 0 : index
      %13 = vector.load %arg8[%c0_11, %c0_12] : memref<32x128xf32, #tpu.memory_space<vmem>>, vector<32x128xf32>
      tpu.vector_store %arg8[%c0_11, %c0_12], %12 {strides = array<i32>} : memref<32x128xf32, #tpu.memory_space<vmem>>, vector<32x128xf32>,
    } else {
    }
    %c0 = arith.constant 0 : index
    %c0_1 = arith.constant 0 : index
    %3 = vector.load %arg8[%c0, %c0_1] : memref<32x128xf32, #tpu.memory_space<vmem>>, vector<32x128xf32>
    %c0_2 = arith.constant 0 : index
    %c0_3 = arith.constant 0 : index
    %4 = vector.load %arg2[%c0_2, %c0_3] : memref<32x512xbf16, #tpu.memory_space<vmem>>, vector<32x512xbf16>
    %c0_4 = arith.constant 0 : index
    %c0_5 = arith.constant 0 : index
    %5 = vector.load %arg3[%c0_4, %c0_5] : memref<512x128xbf16, #tpu.memory_space<vmem>>, vector<512x128xbf16>
    %cst = arith.constant dense<0.000000e+00> : vector<32x128xf32>
    %6 = tpu.matmul %4, %5, %cst {dimension_numbers = #tpu.dot_dimension_numbers<[1], [0], [0], [1], [0, 0, 1, 1], [], []>} : vector<32x512xbf16>, vector<512x128xbf16>, vector<32x128xf32> -> vector<32x128xf32>
    %7 = arith.addf %3, %6 : vector<32x128xf32>
    %c0_6 = arith.constant 0 : index
    %c0_7 = arith.constant 0 : index
    %8 = vector.load %arg8[%c0_6, %c0_7] : memref<32x128xf32, #tpu.memory_space<vmem>>, vector<32x128xf32>
    tpu.vector_store %arg8[%c0_6, %c0_7], %7 {strides = array<i32>} : memref<32x128xf32, #tpu.memory_space<vmem>>, vector<32x128xf32>,
    %c0_i32_8 = arith.constant 0 : i32
    %9 = arith.cmpi eq, %arg1, %c0_i32_8 : i32
    %10 = arith.extui %9 : i1 to i32
    %c0_i32_9 = arith.constant 0 : i32
    %11 = arith.cmpi ne, %10, %c0_i32_9 : i32
    scf.if %11 {
      %c0_10 = arith.constant 0 : index
      %c0_11 = arith.constant 0 : index
      %12 = vector.load %arg8[%c0_10, %c0_11] : memref<32x128xf32, #tpu.memory_space<vmem>>, vector<32x128xf32>
      %c0_12 = arith.constant 0 : index
      %c0_13 = arith.constant 0 : index
      %13 = vector.load %arg4[%c0_12, %c0_13] : memref<1x128xf32, #tpu.memory_space<vmem>>, vector<1x128xf32>
      %14 = vector.broadcast %13 : vector<1x128xf32> to vector<32x128xf32>
      %15 = arith.addf %12, %14 : vector<32x128xf32>
      %cst_14 = arith.constant 0.000000e+00 : f32
      %16 = vector.broadcast %cst_14 : f32 to vector<32x128xf32>
      %17 = arith.maximumf %15, %16 : vector<32x128xf32>
      %18 = arith.truncf %17 : vector<32x128xf32> to vector<32x128xbf16>
      %c0_15 = arith.constant 0 : index
      %c0_16 = arith.constant 0 : index
      %19 = vector.load %arg5[%c0_15, %c0_16] : memref<128x128xbf16, #tpu.memory_space<vmem>>, vector<128x128xbf16>
      %cst_17 = arith.constant dense<0.000000e+00> : vector<32x128xf32>
      %20 = tpu.matmul %18, %19, %cst_17 {dimension_numbers = #tpu.dot_dimension_numbers<[1], [0], [0], [1], [0, 0, 1, 1], [], []>} : vector<32x128xbf16>, vector<128x128xbf16>, vector<32x128xf32> -> vector<32x128xf32>
      %c0_18 = arith.constant 0 : index
      %c0_19 = arith.constant 0 : index
      %21 = vector.load %arg6[%c0_18, %c0_19] : memref<1x128xf32, #tpu.memory_space<vmem>>, vector<1x128xf32>
      %22 = vector.broadcast %21 : vector<1x128xf32> to vector<32x128xf32>
      %23 = arith.addf %20, %22 : vector<32x128xf32>
      %c0_20 = arith.constant 0 : index
      %c0_21 = arith.constant 0 : index
      %24 = vector.load %arg7[%c0_20, %c0_21] : memref<32x128xf32, #tpu.memory_space<vmem>>, vector<32x128xf32>
      tpu.vector_store %arg7[%c0_20, %c0_21], %23 {strides = array<i32>} : memref<32x128xf32, #tpu.memory_space<vmem>>, vector<32x128xf32>,
    } else {
    }
    return
  }
  func.func @transform_0(%arg0: i32, %arg1: i32) -> (i32, i32) {
    %c0_i32 = arith.constant 0 : i32
    return %arg0, %arg1 : i32, i32
  }
  func.func @transform_1(%arg0: i32, %arg1: i32) -> (i32, i32) {
    %c0_i32 = arith.constant 0 : i32
    %c0_i32_0 = arith.constant 0 : i32
    return %arg1, %c0_i32 : i32, i32
  }
  func.func @transform_2(%arg0: i32, %arg1: i32) -> (i32, i32) {
    %c0_i32 = arith.constant 0 : i32
    %c0_i32_0 = arith.constant 0 : i32
    %c0_i32_1 = arith.constant 0 : i32
    return %c0_i32, %c0_i32_0 : i32, i32
  }
  func.func @transform_3(%arg0: i32, %arg1: i32) -> (i32, i32) {
    %c0_i32 = arith.constant 0 : i32
    %c0_i32_0 = arith.constant 0 : i32
    %c0_i32_1 = arith.constant 0 : i32
    return %c0_i32, %c0_i32_0 : i32, i32
  }
  func.func @transform_4(%arg0: i32, %arg1: i32) -> (i32, i32) {
    %c0_i32 = arith.constant 0 : i32
    %c0_i32_0 = arith.constant 0 : i32
    %c0_i32_1 = arith.constant 0 : i32
    return %c0_i32, %c0_i32_0 : i32, i32
  }
  func.func @transform_5(%arg0: i32, %arg1: i32) -> (i32, i32) {
    %c0_i32 = arith.constant 0 : i32
    %c0_i32_0 = arith.constant 0 : i32
    return %arg0, %c0_i32 : i32, i32
  }
}

</mosaic_0001>

<llo_original>
// kernel: encoder_forward.2
$region0: #{encoder_forward.2}
  #allocation0 [shape = 'u32[]', space=smem, size = 0x4, offset = 0x4, fixed_abs, tag = 'smem constant byte address 0x4 - core index']
  #allocation1 [shape = 'u32[144,128]{1,0:T(1,128)}', space=vmem, size = 0x12000, scoped, tag = 'internal scratch']
  #allocation2 [shape = 'f32[128,128]{1,0:T(8,128)}', space=vmem, size = 0x10000, scoped, tag = 'scratch operand']
  %s0 = inlined_call_operand.vmem [shape: bf16[128,128], index: 0, kind: input, shape index: {}]
  %s1 = inlined_call_operand.vmem [shape: bf16[128,128], index: 1, kind: input, shape index: {}]
  %s2 = inlined_call_operand.vmem [shape: f32[1,128], index: 2, kind: input, shape index: {}]
  %s3 = inlined_call_operand.vmem [shape: f32[128,128], index: 3, kind: output, shape index: {}]
  %s4 = sld [smem:[#allocation0]]
  $region30: #{encoder_forward.2} parent=0
    _
  %s6 = ssub.s32 1, %s4
  %s7 = scalar_select 0, %s6, %s4
  // Predicated region
  $region2: #{encoder_forward.2} parent=0 // pred_check
    _
  $region3: #{encoder_forward.2} parent=0 // pred_check_branch
    %9 = sbr.rel (0) target = $region5
  $region4: #{encoder_forward.2} parent=0 // pred_region
    _
  $region5: #{encoder_forward.2} parent=0 // pred_fallthru
    _
  // Predicated region
  $region6: #{encoder_forward.2} parent=0 // pred_check
    _
  $region7: #{encoder_forward.2} parent=0 // pred_check_branch
    %11 = sbr.rel (0) target = $region9
  $region8: #{encoder_forward.2} parent=0 // pred_region
    _
  $region9: #{encoder_forward.2} parent=0 // pred_fallthru
    _
  // Predicated region
  $region10: #{encoder_forward.2} parent=0 // pred_check
    _
  $region11: #{encoder_forward.2} parent=0 // pred_check_branch
    %13 = sbr.rel (0) target = $region13
  $region12: #{encoder_forward.2} parent=0 // pred_region
    _
  $region13: #{encoder_forward.2} parent=0 // pred_fallthru
    _
  %p15 = scmp.eq.s32.totalorder 0, 0
  // Predicated region
  $region14: #{encoder_forward.2} parent=0 // pred_check
    %p16 = pneg %p15
  $region15: #{encoder_forward.2} parent=0 // pred_check_branch
    %18 = sbr.rel (%p16) target = $region17
  $region16: #{encoder_forward.2} parent=0 // pred_region
    %19 = vst [vmem:[#allocation2] sm:$0xff] 0.0
    %20 = vst [vmem:[#allocation2 + $0x8] sm:$0xff] 0.0
    %21 = vst [vmem:[#allocation2 + $0x10] sm:$0xff] 0.0
    %22 = vst [vmem:[#allocation2 + $0x18] sm:$0xff] 0.0
    %23 = vst [vmem:[#allocation2 + $0x20] sm:$0xff] 0.0
    %24 = vst [vmem:[#allocation2 + $0x28] sm:$0xff] 0.0
    %25 = vst [vmem:[#allocation2 + $0x30] sm:$0xff] 0.0
    %26 = vst [vmem:[#allocation2 + $0x38] sm:$0xff] 0.0
    %27 = vst [vmem:[#allocation2 + $0x40] sm:$0xff] 0.0
    %28 = vst [vmem:[#allocation2 + $0x48] sm:$0xff] 0.0
    %29 = vst [vmem:[#allocation2 + $0x50] sm:$0xff] 0.0
    %30 = vst [vmem:[#allocation2 + $0x58] sm:$0xff] 0.0
    %31 = vst [vmem:[#allocation2 + $0x60] sm:$0xff] 0.0
    %32 = vst [vmem:[#allocation2 + $0x68] sm:$0xff] 0.0
    %33 = vst [vmem:[#allocation2 + $0x70] sm:$0xff] 0.0
    %34 = vst [vmem:[#allocation2 + $0x78] sm:$0xff] 0.0
  $region17: #{encoder_forward.2} parent=0 // pred_fallthru
    _
  %v35 = vld [vmem:[#allocation2] sm:$0xff]
  %v36 = vld [vmem:[#allocation2 + $0x8] sm:$0xff]
  %v37 = vld [vmem:[#allocation2 + $0x10] sm:$0xff]
  %v38 = vld [vmem:[#allocation2 + $0x18] sm:$0xff]
  %v39 = vld [vmem:[#allocation2 + $0x20] sm:$0xff]
  %v40 = vld [vmem:[#allocation2 + $0x28] sm:$0xff]
  %v41 = vld [vmem:[#allocation2 + $0x30] sm:$0xff]
  %v42 = vld [vmem:[#allocation2 + $0x38] sm:$0xff]
  %v43 = vld [vmem:[#allocation2 + $0x40] sm:$0xff]
  %v44 = vld [vmem:[#allocation2 + $0x48] sm:$0xff]
  %v45 = vld [vmem:[#allocation2 + $0x50] sm:$0xff]
  %v46 = vld [vmem:[#allocation2 + $0x58] sm:$0xff]
  %v47 = vld [vmem:[#allocation2 + $0x60] sm:$0xff]
  %v48 = vld [vmem:[#allocation2 + $0x68] sm:$0xff]
  %v49 = vld [vmem:[#allocation2 + $0x70] sm:$0xff]
  %v50 = vld [vmem:[#allocation2 + $0x78] sm:$0xff]
  %v51 = vld [vmem:[%s0] sm:$0xf]
  %v52 = vld [vmem:[%s0 + $0x4] sm:$0xf]
  %v53 = vld [vmem:[%s0 + $0x8] sm:$0xf]
  %v54 = vld [vmem:[%s0 + $0xc] sm:$0xf]
  %v55 = vld [vmem:[%s0 + $0x10] sm:$0xf]
  %v56 = vld [vmem:[%s0 + $0x14] sm:$0xf]
  %v57 = vld [vmem:[%s0 + $0x18] sm:$0xf]
  %v58 = vld [vmem:[%s0 + $0x1c] sm:$0xf]
  %v59 = vld [vmem:[%s0 + $0x20] sm:$0xf]
  %v60 = vld [vmem:[%s0 + $0x24] sm:$0xf]
  %v61 = vld [vmem:[%s0 + $0x28] sm:$0xf]
  %v62 = vld [vmem:[%s0 + $0x2c] sm:$0xf]
  %v63 = vld [vmem:[%s0 + $0x30] sm:$0xf]
  %v64 = vld [vmem:[%s0 + $0x34] sm:$0xf]
  %v65 = vld [vmem:[%s0 + $0x38] sm:$0xf]
  %v66 = vld [vmem:[%s0 + $0x3c] sm:$0xf]
  %v67 = vld [vmem:[%s1] sm:$0xf]
  %v68 = vld [vmem:[%s1 + $0x4] sm:$0xf]
  %v69 = vld [vmem:[%s1 + $0x8] sm:$0xf]
  %v70 = vld [vmem:[%s1 + $0xc] sm:$0xf]
  %v71 = vld [vmem:[%s1 + $0x10] sm:$0xf]
  %v72 = vld [vmem:[%s1 + $0x14] sm:$0xf]
  %v73 = vld [vmem:[%s1 + $0x18] sm:$0xf]
  %v74 = vld [vmem:[%s1 + $0x1c] sm:$0xf]
  %v75 = vld [vmem:[%s1 + $0x20] sm:$0xf]
  %v76 = vld [vmem:[%s1 + $0x24] sm:$0xf]
  %v77 = vld [vmem:[%s1 + $0x28] sm:$0xf]
  %v78 = vld [vmem:[%s1 + $0x2c] sm:$0xf]
  %v79 = vld [vmem:[%s1 + $0x30] sm:$0xf]
  %v80 = vld [vmem:[%s1 + $0x34] sm:$0xf]
  %v81 = vld [vmem:[%s1 + $0x38] sm:$0xf]
  %v82 = vld [vmem:[%s1 + $0x3c] sm:$0xf]
  %v99 = vunpack.c.l.b16 %v51
  %v100 = vunpack.c.l.b16 %v52
  %v101 = vunpack.c.l.b16 %v53
  %v102 = vunpack.c.l.b16 %v54
  %v103 = vunpack.c.l.b16 %v55
  %v104 = vunpack.c.l.b16 %v56
  %v105 = vunpack.c.l.b16 %v57
  %v106 = vunpack.c.l.b16 %v58
  %v107 = vunpack.c.l.b16 %v59
  %v108 = vunpack.c.l.b16 %v60
  %v109 = vunpack.c.l.b16 %v61
  %v110 = vunpack.c.l.b16 %v62
  %v111 = vunpack.c.l.b16 %v63
  %v112 = vunpack.c.l.b16 %v64
  %v113 = vunpack.c.l.b16 %v65
  %v114 = vunpack.c.l.b16 %v66
  %v115 = vpack.c.b16 %v100, %v99
  %v116 = vpack.c.b16 %v102, %v101
  %v117 = vpack.c.b16 %v104, %v103
  %v118 = vpack.c.b16 %v106, %v105
  %v119 = vpack.c.b16 %v108, %v107
  %v120 = vpack.c.b16 %v110, %v109
  %v121 = vpack.c.b16 %v112, %v111
  %v122 = vpack.c.b16 %v114, %v113
  %v147 = vunpack.c.l.b16 %v67
  %v148 = vunpack.c.l.b16 %v68
  %v149 = vunpack.c.l.b16 %v69
  %v150 = vunpack.c.l.b16 %v70
  %v151 = vunpack.c.l.b16 %v71
  %v152 = vunpack.c.l.b16 %v72
  %v153 = vunpack.c.l.b16 %v73
  %v154 = vunpack.c.l.b16 %v74
  %v155 = vunpack.c.l.b16 %v75
  %v156 = vunpack.c.l.b16 %v76
  %v157 = vunpack.c.l.b16 %v77
  %v158 = vunpack.c.l.b16 %v78
  %v159 = vunpack.c.l.b16 %v79
  %v160 = vunpack.c.l.b16 %v80
  %v161 = vunpack.c.l.b16 %v81
  %v162 = vunpack.c.l.b16 %v82
  %v163 = vpack.c.b16 %v148, %v147
  %v164 = vpack.c.b16 %v150, %v149
  %v165 = vpack.c.b16 %v152, %v151
  %v166 = vpack.c.b16 %v154, %v153
  %v167 = vpack.c.b16 %v156, %v155
  %v168 = vpack.c.b16 %v158, %v157
  %v169 = vpack.c.b16 %v160, %v159
  %v170 = vpack.c.b16 %v162, %v161
  %179 = vmatprep.subr.bf16.mxu0 0
  %180 = vmatpush1.bf16.msra.mxu0 %v170
  %181 = vmatprep.subr.bf16.mxu0 0
  %182 = vmatpush1.bf16.msra.mxu0 %v169
  %183 = vmatprep.subr.bf16.mxu0 0
  %184 = vmatpush1.bf16.msra.mxu0 %v168
  %185 = vmatprep.subr.bf16.mxu0 0
  %186 = vmatpush1.bf16.msra.mxu0 %v167
  %187 = vmatprep.subr.bf16.mxu0 0
  %188 = vmatpush1.bf16.msra.mxu0 %v166
  %189 = vmatprep.subr.bf16.mxu0 0
  %190 = vmatpush1.bf16.msra.mxu0 %v165
  %191 = vmatprep.subr.bf16.mxu0 0
  %192 = vmatpush1.bf16.msra.mxu0 %v164
  %193 = vmatprep.subr.bf16.mxu0 0
  %194 = vmatpush1.bf16.msra.mxu0 %v163
  %195 = vmatprep.subr.bf16.mxu0 0
  %196 = vmatpush2.bf16.msra.mxu0 0
  %197 = vmatprep.subr.bf16.mxu0 0
  %198 = vmatpush2.bf16.msra.mxu0 0
  %199 = vmatprep.subr.bf16.mxu0 0
  %200 = vmatpush2.bf16.msra.mxu0 0
  %201 = vmatprep.subr.bf16.mxu0 0
  %202 = vmatpush2.bf16.msra.mxu0 0
  %203 = vmatprep.subr.bf16.mxu0 0
  %204 = vmatpush2.bf16.msra.mxu0 0
  %205 = vmatprep.subr.bf16.mxu0 0
  %206 = vmatpush2.bf16.msra.mxu0 0
  %207 = vmatprep.subr.bf16.mxu0 0
  %208 = vmatpush2.bf16.msra.mxu0 0
  %209 = vmatprep.subr.bf16.mxu0 0
  %210 = vmatpush2.bf16.msra.mxu0 0
  %211 = vmatprep.mubr.bf16.mxu0 0
  %212 = vmatmul.mubr.bf16.gmra.mxu0 %v115
  %v213 = vpop.f32.mrf.mxu0
  %v214 = vadd.f32 0.0, %v213
  %v215 = vpop.f32.mrf.mxu0
  %v216 = vpop.f32.mrf.mxu0
  %v217 = vadd.f32 0.0, %v216
  %v218 = vpop.f32.mrf.mxu0
  %219 = vmatprep.mubr.bf16.mxu0 0
  %220 = vmatmul.mubr.bf16.gmra.mxu0 %v116
  %v221 = vpop.f32.mrf.mxu0
  %v222 = vadd.f32 0.0, %v221
  %v223 = vpop.f32.mrf.mxu0
  %v224 = vpop.f32.mrf.mxu0
  %v225 = vadd.f32 0.0, %v224
  %v226 = vpop.f32.mrf.mxu0
  %227 = vmatprep.mubr.bf16.mxu0 0
  %228 = vmatmul.mubr.bf16.gmra.mxu0 %v117
  %v229 = vpop.f32.mrf.mxu0
  %v230 = vadd.f32 0.0, %v229
  %v231 = vpop.f32.mrf.mxu0
  %v232 = vpop.f32.mrf.mxu0
  %v233 = vadd.f32 0.0, %v232
  %v234 = vpop.f32.mrf.mxu0
  %235 = vmatprep.mubr.bf16.mxu0 0
  %236 = vmatmul.mubr.bf16.gmra.mxu0 %v118
  %v237 = vpop.f32.mrf.mxu0
  %v238 = vadd.f32 0.0, %v237
  %v239 = vpop.f32.mrf.mxu0
  %v240 = vpop.f32.mrf.mxu0
  %v241 = vadd.f32 0.0, %v240
  %v242 = vpop.f32.mrf.mxu0
  %243 = vmatprep.mubr.bf16.mxu0 0
  %244 = vmatmul.mubr.bf16.gmra.mxu0 %v119
  %v245 = vpop.f32.mrf.mxu0
  %v246 = vadd.f32 0.0, %v245
  %v247 = vpop.f32.mrf.mxu0
  %v248 = vpop.f32.mrf.mxu0
  %v249 = vadd.f32 0.0, %v248
  %v250 = vpop.f32.mrf.mxu0
  %251 = vmatprep.mubr.bf16.mxu0 0
  %252 = vmatmul.mubr.bf16.gmra.mxu0 %v120
  %v253 = vpop.f32.mrf.mxu0
  %v254 = vadd.f32 0.0, %v253
  %v255 = vpop.f32.mrf.mxu0
  %v256 = vpop.f32.mrf.mxu0
  %v257 = vadd.f32 0.0, %v256
  %v258 = vpop.f32.mrf.mxu0
  %259 = vmatprep.mubr.bf16.mxu0 0
  %260 = vmatmul.mubr.bf16.gmra.mxu0 %v121
  %v261 = vpop.f32.mrf.mxu0
  %v262 = vadd.f32 0.0, %v261
  %v263 = vpop.f32.mrf.mxu0
  %v264 = vpop.f32.mrf.mxu0
  %v265 = vadd.f32 0.0, %v264
  %v266 = vpop.f32.mrf.mxu0
  %267 = vmatprep.mubr.bf16.mxu0 0
  %268 = vmatmul.mubr.bf16.gmra.mxu0 %v122
  %v269 = vpop.f32.mrf.mxu0
  %v270 = vadd.f32 0.0, %v269
  %v271 = vpop.f32.mrf.mxu0
  %v272 = vpop.f32.mrf.mxu0
  %v273 = vadd.f32 0.0, %v272
  %v274 = vpop.f32.mrf.mxu0
  %275 = vdwg.mxu0
  %v276 = vadd.f32 %v35, %v214
  %v277 = vadd.f32 %v36, %v217
  %v278 = vadd.f32 %v37, %v222
  %v279 = vadd.f32 %v38, %v225
  %v280 = vadd.f32 %v39, %v230
  %v281 = vadd.f32 %v40, %v233
  %v282 = vadd.f32 %v41, %v238
  %v283 = vadd.f32 %v42, %v241
  %v284 = vadd.f32 %v43, %v246
  %v285 = vadd.f32 %v44, %v249
  %v286 = vadd.f32 %v45, %v254
  %v287 = vadd.f32 %v46, %v257
  %v288 = vadd.f32 %v47, %v262
  %v289 = vadd.f32 %v48, %v265
  %v290 = vadd.f32 %v49, %v270
  %v291 = vadd.f32 %v50, %v273
  %292 = vst [vmem:[#allocation2] sm:$0xff] %v276
  %293 = vst [vmem:[#allocation2 + $0x8] sm:$0xff] %v277
  %294 = vst [vmem:[#allocation2 + $0x10] sm:$0xff] %v278
  %295 = vst [vmem:[#allocation2 + $0x18] sm:$0xff] %v279
  %296 = vst [vmem:[#allocation2 + $0x20] sm:$0xff] %v280
  %297 = vst [vmem:[#allocation2 + $0x28] sm:$0xff] %v281
  %298 = vst [vmem:[#allocation2 + $0x30] sm:$0xff] %v282
  %299 = vst [vmem:[#allocation2 + $0x38] sm:$0xff] %v283
  %300 = vst [vmem:[#allocation2 + $0x40] sm:$0xff] %v284
  %301 = vst [vmem:[#allocation2 + $0x48] sm:$0xff] %v285
  %302 = vst [vmem:[#allocation2 + $0x50] sm:$0xff] %v286
  %303 = vst [vmem:[#allocation2 + $0x58] sm:$0xff] %v287
  %304 = vst [vmem:[#allocation2 + $0x60] sm:$0xff] %v288
  %305 = vst [vmem:[#allocation2 + $0x68] sm:$0xff] %v289
  %306 = vst [vmem:[#allocation2 + $0x70] sm:$0xff] %v290
  %307 = vst [vmem:[#allocation2 + $0x78] sm:$0xff] %v291
  // Predicated region
  $region18: #{encoder_forward.2} parent=0 // pred_check
    %p308 = pneg %p15
  $region19: #{encoder_forward.2} parent=0 // pred_check_branch
    %310 = sbr.rel (%p308) target = $region21
  $region20: #{encoder_forward.2} parent=0 // pred_region
    %v311 = vld [vmem:[#allocation2] sm:$0xff]
    %v312 = vld [vmem:[#allocation2 + $0x8] sm:$0xff]
    %v313 = vld [vmem:[#allocation2 + $0x10] sm:$0xff]
    %v314 = vld [vmem:[#allocation2 + $0x18] sm:$0xff]
    %v315 = vld [vmem:[#allocation2 + $0x20] sm:$0xff]
    %v316 = vld [vmem:[#allocation2 + $0x28] sm:$0xff]
    %v317 = vld [vmem:[#allocation2 + $0x30] sm:$0xff]
    %v318 = vld [vmem:[#allocation2 + $0x38] sm:$0xff]
    %v319 = vld [vmem:[#allocation2 + $0x40] sm:$0xff]
    %v320 = vld [vmem:[#allocation2 + $0x48] sm:$0xff]
    %v321 = vld [vmem:[#allocation2 + $0x50] sm:$0xff]
    %v322 = vld [vmem:[#allocation2 + $0x58] sm:$0xff]
    %v323 = vld [vmem:[#allocation2 + $0x60] sm:$0xff]
    %v324 = vld [vmem:[#allocation2 + $0x68] sm:$0xff]
    %v325 = vld [vmem:[#allocation2 + $0x70] sm:$0xff]
    %v326 = vld [vmem:[#allocation2 + $0x78] sm:$0xff]
    %v327 = vld [vmem:[%s2] sm:$0x1]
    %v329 = vlaneseq
    %v330 = vshrl.u32 %v329, 7
    %v331 = vsub.s32 0, %v330
    %v332 = vrot.slane %v327, %v331
    %v334 = vadd.f32 %v311, %v332
    %v335 = vadd.f32 %v312, %v332
    %v336 = vadd.f32 %v313, %v332
    %v337 = vadd.f32 %v314, %v332
    %v338 = vadd.f32 %v315, %v332
    %v339 = vadd.f32 %v316, %v332
    %v340 = vadd.f32 %v317, %v332
    %v341 = vadd.f32 %v318, %v332
    %v342 = vadd.f32 %v319, %v332
    %v343 = vadd.f32 %v320, %v332
    %v344 = vadd.f32 %v321, %v332
    %v345 = vadd.f32 %v322, %v332
    %v346 = vadd.f32 %v323, %v332
    %v347 = vadd.f32 %v324, %v332
    %v348 = vadd.f32 %v325, %v332
    %v349 = vadd.f32 %v326, %v332
    %v350 = vmax.f32 %v334, 0.0
    %v351 = vmax.f32 %v335, 0.0
    %v352 = vmax.f32 %v336, 0.0
    %v353 = vmax.f32 %v337, 0.0
    %v354 = vmax.f32 %v338, 0.0
    %v355 = vmax.f32 %v339, 0.0
    %v356 = vmax.f32 %v340, 0.0
    %v357 = vmax.f32 %v341, 0.0
    %v358 = vmax.f32 %v342, 0.0
    %v359 = vmax.f32 %v343, 0.0
    %v360 = vmax.f32 %v344, 0.0
    %v361 = vmax.f32 %v345, 0.0
    %v362 = vmax.f32 %v346, 0.0
    %v363 = vmax.f32 %v347, 0.0
    %v364 = vmax.f32 %v348, 0.0
    %v365 = vmax.f32 %v349, 0.0
    %366 = vst [vmem:[%s3] sm:$0xff] %v350
    %367 = vst [vmem:[%s3 + $0x8] sm:$0xff] %v351
    %368 = vst [vmem:[%s3 + $0x10] sm:$0xff] %v352
    %369 = vst [vmem:[%s3 + $0x18] sm:$0xff] %v353
    %370 = vst [vmem:[%s3 + $0x20] sm:$0xff] %v354
    %371 = vst [vmem:[%s3 + $0x28] sm:$0xff] %v355
    %372 = vst [vmem:[%s3 + $0x30] sm:$0xff] %v356
    %373 = vst [vmem:[%s3 + $0x38] sm:$0xff] %v357
    %374 = vst [vmem:[%s3 + $0x40] sm:$0xff] %v358
    %375 = vst [vmem:[%s3 + $0x48] sm:$0xff] %v359
    %376 = vst [vmem:[%s3 + $0x50] sm:$0xff] %v360
    %377 = vst [vmem:[%s3 + $0x58] sm:$0xff] %v361
    %378 = vst [vmem:[%s3 + $0x60] sm:$0xff] %v362
    %379 = vst [vmem:[%s3 + $0x68] sm:$0xff] %v363
    %380 = vst [vmem:[%s3 + $0x70] sm:$0xff] %v364
    %381 = vst [vmem:[%s3 + $0x78] sm:$0xff] %v365
  $region21: #{encoder_forward.2} parent=0 // pred_fallthru
    _
  // Predicated region
  $region22: #{encoder_forward.2} parent=0 // pred_check
    _
  $region23: #{encoder_forward.2} parent=0 // pred_check_branch
    %383 = sbr.rel (0) target = $region25
  $region24: #{encoder_forward.2} parent=0 // pred_region
    _
  $region25: #{encoder_forward.2} parent=0 // pred_fallthru
    _
  // Predicated region
  $region26: #{encoder_forward.2} parent=0 // pred_check
    _
  $region27: #{encoder_forward.2} parent=0 // pred_check_branch
    %385 = sbr.rel (0) target = $region29
  $region28: #{encoder_forward.2} parent=0 // pred_region
    _
  $region29: #{encoder_forward.2} parent=0 // pred_fallthru
    _

// kernel: encoder_forward.3
$region0: #{encoder_forward.3}
  #allocation0 [shape = 'u32[]', space=smem, size = 0x4, offset = 0x4, fixed_abs, tag = 'smem constant byte address 0x4 - core index']
  #allocation1 [shape = 'u32[144,128]{1,0:T(1,128)}', space=vmem, size = 0x12000, scoped, tag = 'internal scratch']
  #allocation2 [shape = 'f32[32,128]{1,0:T(8,128)}', space=vmem, size = 0x4000, scoped, tag = 'scratch operand']
  %s0 = inlined_call_operand.vmem [shape: bf16[32,512], index: 0, kind: input, shape index: {}]
  %s1 = inlined_call_operand.vmem [shape: bf16[512,128], index: 1, kind: input, shape index: {}]
  %s2 = inlined_call_operand.vmem [shape: f32[1,128], index: 2, kind: input, shape index: {}]
  %s3 = inlined_call_operand.vmem [shape: bf16[128,128], index: 3, kind: input, shape index: {}]
  %s4 = inlined_call_operand.vmem [shape: f32[1,128], index: 4, kind: input, shape index: {}]
  %s5 = inlined_call_operand.hbm [shape: f32[32,128], index: 5, kind: output, shape index: {}]
  %s6 = sld [smem:[#allocation0]]
  $region38: #{encoder_forward.3} parent=0
    _
  %s8 = ssub.s32 1, %s6
  %s9 = scalar_select 0, %s8, %s6
  $region1: #{encoder_forward.3} parent=0
    #allocation3 [shape = 'u8[16384]{0}', space=vmem, size = 0x4000, scoped, tag = 'output window, operand 0, single buffered']
    #allocation4 [shape = 's32[1]{0}', space=sflag, size = 0x4, scoped, tag = 'scoped memory for encoder_forward.3']
    %10 = vsyncpa [#allocation4], 0
    // Predicated region
    $region2: #{encoder_forward.3} parent=1 // pred_check
      _
    $region3: #{encoder_forward.3} parent=1 // pred_check_branch
      %12 = sbr.rel (0) target = $region5
    $region4: #{encoder_forward.3} parent=1 // pred_region
      _
    $region5: #{encoder_forward.3} parent=1 // pred_fallthru
      _
    // Predicated region
    $region6: #{encoder_forward.3} parent=1 // pred_check
      _
    $region7: #{encoder_forward.3} parent=1 // pred_check_branch
      %14 = sbr.rel (0) target = $region9
    $region8: #{encoder_forward.3} parent=1 // pred_region
      _
    $region9: #{encoder_forward.3} parent=1 // pred_fallthru
      _
    // Predicated region
    $region10: #{encoder_forward.3} parent=1 // pred_check
      _
    $region11: #{encoder_forward.3} parent=1 // pred_check_branch
      %16 = sbr.rel (0) target = $region13
    $region12: #{encoder_forward.3} parent=1 // pred_region
      _
    $region13: #{encoder_forward.3} parent=1 // pred_fallthru
      _
    // Predicated region
    $region14: #{encoder_forward.3} parent=1 // pred_check
      _
    $region15: #{encoder_forward.3} parent=1 // pred_check_branch
      %18 = sbr.rel (0) target = $region17
    $region16: #{encoder_forward.3} parent=1 // pred_region
      _
    $region17: #{encoder_forward.3} parent=1 // pred_fallthru
      _
    // Predicated region
    $region18: #{encoder_forward.3} parent=1 // pred_check
      _
    $region19: #{encoder_forward.3} parent=1 // pred_check_branch
      %20 = sbr.rel (0) target = $region21
    $region20: #{encoder_forward.3} parent=1 // pred_region
      _
    $region21: #{encoder_forward.3} parent=1 // pred_fallthru
      _
    %p22 = scmp.eq.s32.totalorder 0, 0
    // Predicated region
    $region22: #{encoder_forward.3} parent=1 // pred_check
      %p23 = pneg %p22
    $region23: #{encoder_forward.3} parent=1 // pred_check_branch
      %25 = sbr.rel (%p23) target = $region25
    $region24: #{encoder_forward.3} parent=1 // pred_region
      %26 = vst [vmem:[#allocation2] sm:$0xff] 0.0
      %27 = vst [vmem:[#allocation2 + $0x8] sm:$0xff] 0.0
      %28 = vst [vmem:[#allocation2 + $0x10] sm:$0xff] 0.0
      %29 = vst [vmem:[#allocation2 + $0x18] sm:$0xff] 0.0
    $region25: #{encoder_forward.3} parent=1 // pred_fallthru
      _
    %v30 = vld [vmem:[#allocation2] sm:$0xff]
    %v31 = vld [vmem:[#allocation2 + $0x8] sm:$0xff]
    %v32 = vld [vmem:[#allocation2 + $0x10] sm:$0xff]
    %v33 = vld [vmem:[#allocation2 + $0x18] sm:$0xff]
    %v34 = vld [vmem:[%s0] sm:$0xff]
    %v35 = vld [vmem:[%s0 + $0x8] sm:$0xff]
    %v36 = vld [vmem:[%s0 + $0x10] sm:$0xff]
    %v37 = vld [vmem:[%s0 + $0x18] sm:$0xff]
    %v38 = vld [vmem:[%s0 + $0x20] sm:$0xff]
    %v39 = vld [vmem:[%s0 + $0x28] sm:$0xff]
    %v40 = vld [vmem:[%s0 + $0x30] sm:$0xff]
    %v41 = vld [vmem:[%s0 + $0x38] sm:$0xff]
    %v42 = vld [vmem:[%s1] sm:$0xf]
    %v43 = vld [vmem:[%s1 + $0x4] sm:$0xf]
    %v44 = vld [vmem:[%s1 + $0x8] sm:$0xf]
    %v45 = vld [vmem:[%s1 + $0xc] sm:$0xf]
    %v46 = vld [vmem:[%s1 + $0x10] sm:$0xf]
    %v47 = vld [vmem:[%s1 + $0x14] sm:$0xf]
    %v48 = vld [vmem:[%s1 + $0x18] sm:$0xf]
    %v49 = vld [vmem:[%s1 + $0x1c] sm:$0xf]
    %v50 = vld [vmem:[%s1 + $0x20] sm:$0xf]
    %v51 = vld [vmem:[%s1 + $0x24] sm:$0xf]
    %v52 = vld [vmem:[%s1 + $0x28] sm:$0xf]
    %v53 = vld [vmem:[%s1 + $0x2c] sm:$0xf]
    %v54 = vld [vmem:[%s1 + $0x30] sm:$0xf]
    %v55 = vld [vmem:[%s1 + $0x34] sm:$0xf]
    %v56 = vld [vmem:[%s1 + $0x38] sm:$0xf]
    %v57 = vld [vmem:[%s1 + $0x3c] sm:$0xf]
    %v58 = vld [vmem:[%s1 + $0x40] sm:$0xf]
    %v59 = vld [vmem:[%s1 + $0x44] sm:$0xf]
    %v60 = vld [vmem:[%s1 + $0x48] sm:$0xf]
    %v61 = vld [vmem:[%s1 + $0x4c] sm:$0xf]
    %v62 = vld [vmem:[%s1 + $0x50] sm:$0xf]
    %v63 = vld [vmem:[%s1 + $0x54] sm:$0xf]
    %v64 = vld [vmem:[%s1 + $0x58] sm:$0xf]
    %v65 = vld [vmem:[%s1 + $0x5c] sm:$0xf]
    %v66 = vld [vmem:[%s1 + $0x60] sm:$0xf]
    %v67 = vld [vmem:[%s1 + $0x64] sm:$0xf]
    %v68 = vld [vmem:[%s1 + $0x68] sm:$0xf]
    %v69 = vld [vmem:[%s1 + $0x6c] sm:$0xf]
    %v70 = vld [vmem:[%s1 + $0x70] sm:$0xf]
    %v71 = vld [vmem:[%s1 + $0x74] sm:$0xf]
    %v72 = vld [vmem:[%s1 + $0x78] sm:$0xf]
    %v73 = vld [vmem:[%s1 + $0x7c] sm:$0xf]
    %v74 = vld [vmem:[%s1 + $0x80] sm:$0xf]
    %v75 = vld [vmem:[%s1 + $0x84] sm:$0xf]
    %v76 = vld [vmem:[%s1 + $0x88] sm:$0xf]
    %v77 = vld [vmem:[%s1 + $0x8c] sm:$0xf]
    %v78 = vld [vmem:[%s1 + $0x90] sm:$0xf]
    %v79 = vld [vmem:[%s1 + $0x94] sm:$0xf]
    %v80 = vld [vmem:[%s1 + $0x98] sm:$0xf]
    %v81 = vld [vmem:[%s1 + $0x9c] sm:$0xf]
    %v82 = vld [vmem:[%s1 + $0xa0] sm:$0xf]
    %v83 = vld [vmem:[%s1 + $0xa4] sm:$0xf]
    %v84 = vld [vmem:[%s1 + $0xa8] sm:$0xf]
    %v85 = vld [vmem:[%s1 + $0xac] sm:$0xf]
    %v86 = vld [vmem:[%s1 + $0xb0] sm:$0xf]
    %v87 = vld [vmem:[%s1 + $0xb4] sm:$0xf]
    %v88 = vld [vmem:[%s1 + $0xb8] sm:$0xf]
    %v89 = vld [vmem:[%s1 + $0xbc] sm:$0xf]
    %v90 = vld [vmem:[%s1 + $0xc0] sm:$0xf]
    %v91 = vld [vmem:[%s1 + $0xc4] sm:$0xf]
    %v92 = vld [vmem:[%s1 + $0xc8] sm:$0xf]
    %v93 = vld [vmem:[%s1 + $0xcc] sm:$0xf]
    %v94 = vld [vmem:[%s1 + $0xd0] sm:$0xf]
    %v95 = vld [vmem:[%s1 + $0xd4] sm:$0xf]
    %v96 = vld [vmem:[%s1 + $0xd8] sm:$0xf]
    %v97 = vld [vmem:[%s1 + $0xdc] sm:$0xf]
    %v98 = vld [vmem:[%s1 + $0xe0] sm:$0xf]
    %v99 = vld [vmem:[%s1 + $0xe4] sm:$0xf]
    %v100 = vld [vmem:[%s1 + $0xe8] sm:$0xf]
    %v101 = vld [vmem:[%s1 + $0xec] sm:$0xf]
    %v102 = vld [vmem:[%s1 + $0xf0] sm:$0xf]
    %v103 = vld [vmem:[%s1 + $0xf4] sm:$0xf]
    %v104 = vld [vmem:[%s1 + $0xf8] sm:$0xf]
    %v105 = vld [vmem:[%s1 + $0xfc] sm:$0xf]
    %v114 = vunpack.c.l.b16 %v34
    %v115 = vunpack.c.h.b16 %v34
    %v116 = vunpack.c.l.b16 %v35
    %v117 = vunpack.c.h.b16 %v35
    %v118 = vunpack.c.l.b16 %v36
    %v119 = vunpack.c.h.b16 %v36
    %v120 = vunpack.c.l.b16 %v37
    %v121 = vunpack.c.h.b16 %v37
    %v122 = vunpack.c.l.b16 %v38
    %v123 = vunpack.c.h.b16 %v38
    %v124 = vunpack.c.l.b16 %v39
    %v125 = vunpack.c.h.b16 %v39
    %v126 = vunpack.c.l.b16 %v40
    %v127 = vunpack.c.h.b16 %v40
    %v128 = vunpack.c.l.b16 %v41
    %v129 = vunpack.c.h.b16 %v41
    %v130 = vpack.c.b16 %v118, %v114
    %v131 = vpack.c.b16 %v119, %v115
    %v132 = vpack.c.b16 %v120, %v116
    %v133 = vpack.c.b16 %v121, %v117
    %v134 = vpack.c.b16 %v126, %v122
    %v135 = vpack.c.b16 %v127, %v123
    %v136 = vpack.c.b16 %v128, %v124
    %v137 = vpack.c.b16 %v129, %v125
    %v210 = vunpack.c.l.b16 %v42
    %v211 = vunpack.c.l.b16 %v43
    %v212 = vunpack.c.l.b16 %v44
    %v213 = vunpack.c.l.b16 %v45
    %v214 = vunpack.c.l.b16 %v46
    %v215 = vunpack.c.l.b16 %v47
    %v216 = vunpack.c.l.b16 %v48
    %v217 = vunpack.c.l.b16 %v49
    %v218 = vunpack.c.l.b16 %v50
    %v219 = vunpack.c.l.b16 %v51
    %v220 = vunpack.c.l.b16 %v52
    %v221 = vunpack.c.l.b16 %v53
    %v222 = vunpack.c.l.b16 %v54
    %v223 = vunpack.c.l.b16 %v55
    %v224 = vunpack.c.l.b16 %v56
    %v225 = vunpack.c.l.b16 %v57
    %v226 = vunpack.c.l.b16 %v58
    %v227 = vunpack.c.l.b16 %v59
    %v228 = vunpack.c.l.b16 %v60
    %v229 = vunpack.c.l.b16 %v61
    %v230 = vunpack.c.l.b16 %v62
    %v231 = vunpack.c.l.b16 %v63
    %v232 = vunpack.c.l.b16 %v64
    %v233 = vunpack.c.l.b16 %v65
    %v234 = vunpack.c.l.b16 %v66
    %v235 = vunpack.c.l.b16 %v67
    %v236 = vunpack.c.l.b16 %v68
    %v237 = vunpack.c.l.b16 %v69
    %v238 = vunpack.c.l.b16 %v70
    %v239 = vunpack.c.l.b16 %v71
    %v240 = vunpack.c.l.b16 %v72
    %v241 = vunpack.c.l.b16 %v73
    %v242 = vunpack.c.l.b16 %v74
    %v243 = vunpack.c.l.b16 %v75
    %v244 = vunpack.c.l.b16 %v76
    %v245 = vunpack.c.l.b16 %v77
    %v246 = vunpack.c.l.b16 %v78
    %v247 = vunpack.c.l.b16 %v79
    %v248 = vunpack.c.l.b16 %v80
    %v249 = vunpack.c.l.b16 %v81
    %v250 = vunpack.c.l.b16 %v82
    %v251 = vunpack.c.l.b16 %v83
    %v252 = vunpack.c.l.b16 %v84
    %v253 = vunpack.c.l.b16 %v85
    %v254 = vunpack.c.l.b16 %v86
    %v255 = vunpack.c.l.b16 %v87
    %v256 = vunpack.c.l.b16 %v88
    %v257 = vunpack.c.l.b16 %v89
    %v258 = vunpack.c.l.b16 %v90
    %v259 = vunpack.c.l.b16 %v91
    %v260 = vunpack.c.l.b16 %v92
    %v261 = vunpack.c.l.b16 %v93
    %v262 = vunpack.c.l.b16 %v94
    %v263 = vunpack.c.l.b16 %v95
    %v264 = vunpack.c.l.b16 %v96
    %v265 = vunpack.c.l.b16 %v97
    %v266 = vunpack.c.l.b16 %v98
    %v267 = vunpack.c.l.b16 %v99
    %v268 = vunpack.c.l.b16 %v100
    %v269 = vunpack.c.l.b16 %v101
    %v270 = vunpack.c.l.b16 %v102
    %v271 = vunpack.c.l.b16 %v103
    %v272 = vunpack.c.l.b16 %v104
    %v273 = vunpack.c.l.b16 %v105
    %v274 = vpack.c.b16 %v211, %v210
    %v275 = vpack.c.b16 %v213, %v212
    %v276 = vpack.c.b16 %v215, %v214
    %v277 = vpack.c.b16 %v217, %v216
    %v278 = vpack.c.b16 %v219, %v218
    %v279 = vpack.c.b16 %v221, %v220
    %v280 = vpack.c.b16 %v223, %v222
    %v281 = vpack.c.b16 %v225, %v224
    %v282 = vpack.c.b16 %v227, %v226
    %v283 = vpack.c.b16 %v229, %v228
    %v284 = vpack.c.b16 %v231, %v230
    %v285 = vpack.c.b16 %v233, %v232
    %v286 = vpack.c.b16 %v235, %v234
    %v287 = vpack.c.b16 %v237, %v236
    %v288 = vpack.c.b16 %v239, %v238
    %v289 = vpack.c.b16 %v241, %v240
    %v290 = vpack.c.b16 %v243, %v242
    %v291 = vpack.c.b16 %v245, %v244
    %v292 = vpack.c.b16 %v247, %v246
    %v293 = vpack.c.b16 %v249, %v248
    %v294 = vpack.c.b16 %v251, %v250
    %v295 = vpack.c.b16 %v253, %v252
    %v296 = vpack.c.b16 %v255, %v254
    %v297 = vpack.c.b16 %v257, %v256
    %v298 = vpack.c.b16 %v259, %v258
    %v299 = vpack.c.b16 %v261, %v260
    %v300 = vpack.c.b16 %v263, %v262
    %v301 = vpack.c.b16 %v265, %v264
    %v302 = vpack.c.b16 %v267, %v266
    %v303 = vpack.c.b16 %v269, %v268
    %v304 = vpack.c.b16 %v271, %v270
    %v305 = vpack.c.b16 %v273, %v272
    %338 = vmatprep.subr.bf16.mxu0 0
    %339 = vmatpush1.bf16.msra.mxu0 %v281
    %340 = vmatprep.subr.bf16.mxu0 0
    %341 = vmatpush1.bf16.msra.mxu0 %v280
    %342 = vmatprep.subr.bf16.mxu0 0
    %343 = vmatpush1.bf16.msra.mxu0 %v279
    %344 = vmatprep.subr.bf16.mxu0 0
    %345 = vmatpush1.bf16.msra.mxu0 %v278
    %346 = vmatprep.subr.bf16.mxu0 0
    %347 = vmatpush1.bf16.msra.mxu0 %v277
    %348 = vmatprep.subr.bf16.mxu0 0
    %349 = vmatpush1.bf16.msra.mxu0 %v276
    %350 = vmatprep.subr.bf16.mxu0 0
    %351 = vmatpush1.bf16.msra.mxu0 %v275
    %352 = vmatprep.subr.bf16.mxu0 0
    %353 = vmatpush1.bf16.msra.mxu0 %v274
    %354 = vmatprep.subr.bf16.mxu0 0
    %355 = vmatpush2.bf16.msra.mxu0 %v289
    %356 = vmatprep.subr.bf16.mxu0 0
    %357 = vmatpush2.bf16.msra.mxu0 %v288
    %358 = vmatprep.subr.bf16.mxu0 0
    %359 = vmatpush2.bf16.msra.mxu0 %v287
    %360 = vmatprep.subr.bf16.mxu0 0
    %361 = vmatpush2.bf16.msra.mxu0 %v286
    %362 = vmatprep.subr.bf16.mxu0 0
    %363 = vmatpush2.bf16.msra.mxu0 %v285
    %364 = vmatprep.subr.bf16.mxu0 0
    %365 = vmatpush2.bf16.msra.mxu0 %v284
    %366 = vmatprep.subr.bf16.mxu0 0
    %367 = vmatpush2.bf16.msra.mxu0 %v283
    %368 = vmatprep.subr.bf16.mxu0 0
    %369 = vmatpush2.bf16.msra.mxu0 %v282
    %370 = vmatprep.mubr.bf16.mxu0 %v131
    %371 = vmatmul.mubr.bf16.gmra.mxu0 %v130
    %v372 = vpop.f32.mrf.mxu0
    %v373 = vadd.f32 0.0, %v372
    %v374 = vpop.f32.mrf.mxu0
    %v375 = vpop.f32.mrf.mxu0
    %v376 = vadd.f32 0.0, %v375
    %v377 = vpop.f32.mrf.mxu0
    %378 = vmatprep.mubr.bf16.mxu0 %v135
    %379 = vmatmul.mubr.bf16.gmra.mxu0 %v134
    %v380 = vpop.f32.mrf.mxu0
    %v381 = vadd.f32 0.0, %v380
    %v382 = vpop.f32.mrf.mxu0
    %v383 = vpop.f32.mrf.mxu0
    %v384 = vadd.f32 0.0, %v383
    %v385 = vpop.f32.mrf.mxu0
    %386 = vdwg.mxu0
    %387 = vmatprep.subr.bf16.mxu0 0
    %388 = vmatpush1.bf16.msra.mxu0 %v297
    %389 = vmatprep.subr.bf16.mxu0 0
    %390 = vmatpush1.bf16.msra.mxu0 %v296
    %391 = vmatprep.subr.bf16.mxu0 0
    %392 = vmatpush1.bf16.msra.mxu0 %v295
    %393 = vmatprep.subr.bf16.mxu0 0
    %394 = vmatpush1.bf16.msra.mxu0 %v294
    %395 = vmatprep.subr.bf16.mxu0 0
    %396 = vmatpush1.bf16.msra.mxu0 %v293
    %397 = vmatprep.subr.bf16.mxu0 0
    %398 = vmatpush1.bf16.msra.mxu0 %v292
    %399 = vmatprep.subr.bf16.mxu0 0
    %400 = vmatpush1.bf16.msra.mxu0 %v291
    %401 = vmatprep.subr.bf16.mxu0 0
    %402 = vmatpush1.bf16.msra.mxu0 %v290
    %403 = vmatprep.subr.bf16.mxu0 0
    %404 = vmatpush2.bf16.msra.mxu0 %v305
    %405 = vmatprep.subr.bf16.mxu0 0
    %406 = vmatpush2.bf16.msra.mxu0 %v304
    %407 = vmatprep.subr.bf16.mxu0 0
    %408 = vmatpush2.bf16.msra.mxu0 %v303
    %409 = vmatprep.subr.bf16.mxu0 0
    %410 = vmatpush2.bf16.msra.mxu0 %v302
    %411 = vmatprep.subr.bf16.mxu0 0
    %412 = vmatpush2.bf16.msra.mxu0 %v301
    %413 = vmatprep.subr.bf16.mxu0 0
    %414 = vmatpush2.bf16.msra.mxu0 %v300
    %415 = vmatprep.subr.bf16.mxu0 0
    %416 = vmatpush2.bf16.msra.mxu0 %v299
    %417 = vmatprep.subr.bf16.mxu0 0
    %418 = vmatpush2.bf16.msra.mxu0 %v298
    %419 = vmatprep.mubr.bf16.mxu0 %v133
    %420 = vmatmul.mubr.bf16.gmra.mxu0 %v132
    %v421 = vpop.f32.mrf.mxu0
    %v422 = vadd.f32 %v373, %v421
    %v423 = vpop.f32.mrf.mxu0
    %v424 = vpop.f32.mrf.mxu0
    %v425 = vadd.f32 %v376, %v424
    %v426 = vpop.f32.mrf.mxu0
    %427 = vmatprep.mubr.bf16.mxu0 %v137
    %428 = vmatmul.mubr.bf16.gmra.mxu0 %v136
    %v429 = vpop.f32.mrf.mxu0
    %v430 = vadd.f32 %v381, %v429
    %v431 = vpop.f32.mrf.mxu0
    %v432 = vpop.f32.mrf.mxu0
    %v433 = vadd.f32 %v384, %v432
    %v434 = vpop.f32.mrf.mxu0
    %435 = vdwg.mxu0
    %v436 = vadd.f32 %v30, %v422
    %v437 = vadd.f32 %v31, %v425
    %v438 = vadd.f32 %v32, %v430
    %v439 = vadd.f32 %v33, %v433
    %440 = vst [vmem:[#allocation2] sm:$0xff] %v436
    %441 = vst [vmem:[#allocation2 + $0x8] sm:$0xff] %v437
    %442 = vst [vmem:[#allocation2 + $0x10] sm:$0xff] %v438
    %443 = vst [vmem:[#allocation2 + $0x18] sm:$0xff] %v439
    // Predicated region
    $region26: #{encoder_forward.3} parent=1 // pred_check
      %p444 = pneg %p22
    $region27: #{encoder_forward.3} parent=1 // pred_check_branch
      %446 = sbr.rel (%p444) target = $region29
    $region28: #{encoder_forward.3} parent=1 // pred_region
      %v447 = vld [vmem:[#allocation2] sm:$0xff]
      %v448 = vld [vmem:[#allocation2 + $0x8] sm:$0xff]
      %v449 = vld [vmem:[#allocation2 + $0x10] sm:$0xff]
      %v450 = vld [vmem:[#allocation2 + $0x18] sm:$0xff]
      %v451 = vld [vmem:[%s2] sm:$0x1]
      %v453 = vlaneseq
      %v454 = vshrl.u32 %v453, 7
      %v455 = vsub.s32 0, %v454
      %v456 = vrot.slane %v451, %v455
      %v458 = vadd.f32 %v447, %v456
      %v459 = vadd.f32 %v448, %v456
      %v460 = vadd.f32 %v449, %v456
      %v461 = vadd.f32 %v450, %v456
      %v462 = vmax.f32 %v458, 0.0
      %v463 = vmax.f32 %v459, 0.0
      %v464 = vmax.f32 %v460, 0.0
      %v465 = vmax.f32 %v461, 0.0
      %v466 = vpack.c.bf16 %v463, %v462
      %v467 = vpack.c.bf16 %v465, %v464
      %v468 = vld [vmem:[%s3] sm:$0xf]
      %v469 = vld [vmem:[%s3 + $0x4] sm:$0xf]
      %v470 = vld [vmem:[%s3 + $0x8] sm:$0xf]
      %v471 = vld [vmem:[%s3 + $0xc] sm:$0xf]
      %v472 = vld [vmem:[%s3 + $0x10] sm:$0xf]
      %v473 = vld [vmem:[%s3 + $0x14] sm:$0xf]
      %v474 = vld [vmem:[%s3 + $0x18] sm:$0xf]
      %v475 = vld [vmem:[%s3 + $0x1c] sm:$0xf]
      %v476 = vld [vmem:[%s3 + $0x20] sm:$0xf]
      %v477 = vld [vmem:[%s3 + $0x24] sm:$0xf]
      %v478 = vld [vmem:[%s3 + $0x28] sm:$0xf]
      %v479 = vld [vmem:[%s3 + $0x2c] sm:$0xf]
      %v480 = vld [vmem:[%s3 + $0x30] sm:$0xf]
      %v481 = vld [vmem:[%s3 + $0x34] sm:$0xf]
      %v482 = vld [vmem:[%s3 + $0x38] sm:$0xf]
      %v483 = vld [vmem:[%s3 + $0x3c] sm:$0xf]
      %v484 = vld [vmem:[%s4] sm:$0x1]
      %v486 = vlaneseq
      %v487 = vshrl.u32 %v486, 7
      %v488 = vsub.s32 0, %v487
      %v489 = vrot.slane %v484, %v488
      %v507 = vunpack.c.l.b16 %v468
      %v508 = vunpack.c.l.b16 %v469
      %v509 = vunpack.c.l.b16 %v470
      %v510 = vunpack.c.l.b16 %v471
      %v511 = vunpack.c.l.b16 %v472
      %v512 = vunpack.c.l.b16 %v473
      %v513 = vunpack.c.l.b16 %v474
      %v514 = vunpack.c.l.b16 %v475
      %v515 = vunpack.c.l.b16 %v476
      %v516 = vunpack.c.l.b16 %v477
      %v517 = vunpack.c.l.b16 %v478
      %v518 = vunpack.c.l.b16 %v479
      %v519 = vunpack.c.l.b16 %v480
      %v520 = vunpack.c.l.b16 %v481
      %v521 = vunpack.c.l.b16 %v482
      %v522 = vunpack.c.l.b16 %v483
      %v523 = vpack.c.b16 %v508, %v507
      %v524 = vpack.c.b16 %v510, %v509
      %v525 = vpack.c.b16 %v512, %v511
      %v526 = vpack.c.b16 %v514, %v513
      %v527 = vpack.c.b16 %v516, %v515
      %v528 = vpack.c.b16 %v518, %v517
      %v529 = vpack.c.b16 %v520, %v519
      %v530 = vpack.c.b16 %v522, %v521
      %539 = vmatprep.subr.bf16.mxu0 0
      %540 = vmatpush1.bf16.msra.mxu0 %v530
      %541 = vmatprep.subr.bf16.mxu0 0
      %542 = vmatpush1.bf16.msra.mxu0 %v529
      %543 = vmatprep.subr.bf16.mxu0 0
      %544 = vmatpush1.bf16.msra.mxu0 %v528
      %545 = vmatprep.subr.bf16.mxu0 0
      %546 = vmatpush1.bf16.msra.mxu0 %v527
      %547 = vmatprep.subr.bf16.mxu0 0
      %548 = vmatpush1.bf16.msra.mxu0 %v526
      %549 = vmatprep.subr.bf16.mxu0 0
      %550 = vmatpush1.bf16.msra.mxu0 %v525
      %551 = vmatprep.subr.bf16.mxu0 0
      %552 = vmatpush1.bf16.msra.mxu0 %v524
      %553 = vmatprep.subr.bf16.mxu0 0
      %554 = vmatpush1.bf16.msra.mxu0 %v523
      %555 = vmatprep.subr.bf16.mxu0 0
      %556 = vmatpush2.bf16.msra.mxu0 0
      %557 = vmatprep.subr.bf16.mxu0 0
      %558 = vmatpush2.bf16.msra.mxu0 0
      %559 = vmatprep.subr.bf16.mxu0 0
      %560 = vmatpush2.bf16.msra.mxu0 0
      %561 = vmatprep.subr.bf16.mxu0 0
      %562 = vmatpush2.bf16.msra.mxu0 0
      %563 = vmatprep.subr.bf16.mxu0 0
      %564 = vmatpush2.bf16.msra.mxu0 0
      %565 = vmatprep.subr.bf16.mxu0 0
      %566 = vmatpush2.bf16.msra.mxu0 0
      %567 = vmatprep.subr.bf16.mxu0 0
      %568 = vmatpush2.bf16.msra.mxu0 0
      %569 = vmatprep.subr.bf16.mxu0 0
      %570 = vmatpush2.bf16.msra.mxu0 0
      %571 = vmatprep.mubr.bf16.mxu0 0
      %572 = vmatmul.mubr.bf16.gmra.mxu0 %v466
      %v573 = vpop.f32.mrf.mxu0
      %v574 = vadd.f32 %v489, %v573
      %v575 = vpop.f32.mrf.mxu0
      %v576 = vpop.f32.mrf.mxu0
      %v577 = vadd.f32 %v489, %v576
      %v578 = vpop.f32.mrf.mxu0
      %579 = vmatprep.mubr.bf16.mxu0 0
      %580 = vmatmul.mubr.bf16.gmra.mxu0 %v467
      %v581 = vpop.f32.mrf.mxu0
      %v582 = vadd.f32 %v489, %v581
      %v583 = vpop.f32.mrf.mxu0
      %v584 = vpop.f32.mrf.mxu0
      %v585 = vadd.f32 %v489, %v584
      %v586 = vpop.f32.mrf.mxu0
      %587 = vdwg.mxu0
      %588 = vst [vmem:[#allocation3] sm:$0xff] %v574
      %589 = vst [vmem:[#allocation3 + $0x8] sm:$0xff] %v577
      %590 = vst [vmem:[#allocation3 + $0x10] sm:$0xff] %v582
      %591 = vst [vmem:[#allocation3 + $0x18] sm:$0xff] %v585
    $region29: #{encoder_forward.3} parent=1 // pred_fallthru
      _
    // Predicated region
    $region30: #{encoder_forward.3} parent=1 // pred_check
      _
    $region31: #{encoder_forward.3} parent=1 // pred_check_branch
      %593 = sbr.rel (0) target = $region33
    $region32: #{encoder_forward.3} parent=1 // pred_region
      %s595 = ssub.s32 512, 512
      %596 = vsyncadd [#allocation4], %s595
      %s597 = sshll.u32 [#allocation3], 4
      %s598 = int_to_ptr.vmem [resolvable:$true] %s597
      %603 = dma.vmem_to_hbm [thread:$0]  %s598, 512, %s5, [#allocation4], 128, 128, 8
    $region33: #{encoder_forward.3} parent=1 // pred_fallthru
      _
    // Predicated region
    $region34: #{encoder_forward.3} parent=1 // pred_check
      _
    $region35: #{encoder_forward.3} parent=1 // pred_check_branch
      %605 = sbr.rel (0) target = $region37
    $region36: #{encoder_forward.3} parent=1 // pred_region
      %606 = dma.done [#allocation4], 512
    $region37: #{encoder_forward.3} parent=1 // pred_fallthru
      _
    %607 = vsyncpa [#allocation4], 1

</llo_original>
